<compile_context>
chip_gen: v7x
topology: tpu7x:2x2x1
jax: 0.10.0
libtpu: 0.0.40
codegen_flags: <defaults>
</compile_context>

<pallas_src>
import jax
import jax.numpy as jnp
from jax.experimental import pallas as pl
from jax.experimental.pallas import tpu as pltpu

_LANE = 128      # vreg lane width
_SUBLANE = 8     # f32 sublanes per vreg


def _cdiv(a, b):
    return (a + b - 1) // b


def _pick_tile_rows(total_rows):
    """Rows (of 128 pixels each) per grid step, sized to the chip's VMEM."""
    try:
        vmem_bytes = pltpu.get_tpu_info().vmem_capacity_bytes
    except Exception:
        vmem_bytes = 64 * 1024 * 1024            # conservative: v7x physical VMEM
    # Per step: f32 input block (3, rows, 128) + f32 output block (rows, 128),
    # each double-buffered by the auto-pipeline -> 2 * (3+1) * 4 * 128 * rows B.
    budget = vmem_bytes // 8                      # use ~1/8 of physical VMEM
    rows = budget // (2 * 4 * 4 * _LANE)
    rows = max(_SUBLANE, (rows // _SUBLANE) * _SUBLANE)
    rows = min(rows, 4096)                        # cap: 512K pixels per step
    if total_rows <= rows:
        return total_rows                         # whole (padded) image in one tile
    return rows


def rgb2gray(x, weights=(0.299, 0.587, 0.114)):
    """x: (N, 3, H, W) float32 -> (N, 1, H, W) float32."""
    N, C, H, W = x.shape
    assert C == 3, "RGB2Gray expects 3 input channels"
    wr, wg, wb = (float(w) for w in weights)

    # ---- lane-dense view: (N, 3, H*W) -> pad pixels -> (N, 3, rows, 128) ----
    P = H * W
    total_rows = _cdiv(P, _LANE)
    tile_rows = _pick_tile_rows(total_rows)
    total_rows = _cdiv(total_rows, tile_rows) * tile_rows   # multiple of tile
    P_pad = total_rows * _LANE

    x_flat = x.reshape(N, 3, P)
    if P_pad != P:
        x_flat = jnp.pad(x_flat, ((0, 0), (0, 0), (0, P_pad - P)))
    x_view = x_flat.reshape(N, 3, total_rows, _LANE)

    def kernel(x_ref, o_ref):
        # x_ref: (1, 3, tile_rows, 128) VMEM, o_ref: (1, tile_rows, 128) VMEM
        r = x_ref[0, 0]
        g = x_ref[0, 1]
        b = x_ref[0, 2]
        o_ref[0] = wr * r + wg * g + wb * b       # pure VPU FMA under the DMA

    out = pl.pallas_call(
        kernel,
        out_shape=jax.ShapeDtypeStruct((N, total_rows, _LANE), x.dtype),
        grid=(N, total_rows // tile_rows),
        in_specs=[
            pl.BlockSpec((1, 3, tile_rows, _LANE), lambda n, p: (n, 0, p, 0)),
        ],
        out_specs=pl.BlockSpec((1, tile_rows, _LANE), lambda n, p: (n, p, 0)),
        compiler_params=pltpu.CompilerParams(
            dimension_semantics=("parallel", "parallel"),
            vmem_limit_bytes=32 * 1024 * 1024,
        ),
    )(x_view)

    return out.reshape(N, P_pad)[:, :P].reshape(N, 1, H, W)


if __name__ == "__main__":
    weight = jnp.array([0.299, 0.587, 0.114], dtype=jnp.float32)

    # Small deterministic input matching the module: N=2, C=3 (RGB), H=W=16.
    x = jax.random.uniform(jax.random.PRNGKey(0), (2, 3, 16, 16), dtype=jnp.float32)
    gray = jax.block_until_ready(rgb2gray(x))
    ref = jnp.einsum("nchw,c->nhw", x, weight)[:, None, :, :]
    assert gray.shape == (2, 1, 16, 16)
    assert jnp.allclose(gray, ref, atol=1e-6), "mismatch vs reference (16x16)"

    # Second, non-128-aligned shape to exercise the lane-padding path.
    x2 = jax.random.uniform(jax.random.PRNGKey(1), (2, 3, 40, 56), dtype=jnp.float32)
    gray2 = jax.block_until_ready(rgb2gray(x2))
    ref2 = jnp.einsum("nchw,c->nhw", x2, weight)[:, None, :, :]
    assert gray2.shape == (2, 1, 40, 56)
    assert jnp.allclose(gray2, ref2, atol=1e-6), "mismatch vs reference (40x56)"

    print("KERNEL_OK")
</pallas_src>

<mosaic_0001>
module attributes {stable_mosaic.version = 11 : i64} {
  func.func @kernel(%arg0: i32, %arg1: i32, %arg2: memref<1x3x2x128xf32, #tpu.memory_space<vmem>>, %arg3: memref<1x2x128xf32, #tpu.memory_space<vmem>>) attributes {dimension_semantics = [#tpu.dimension_semantics<parallel>, #tpu.dimension_semantics<parallel>], iteration_bounds = array<i64: 2, 1>, scalar_prefetch = 0 : i64, scratch_operands = 0 : i64, tpu.core_type = #tpu.core_type<tc>, window_params = [{transform_indices = @transform_0, window_bounds = array<i64: 1, 3, 2, 128>}, {transform_indices = @transform_1, window_bounds = array<i64: 1, 2, 128>}]} {
    %c0 = arith.constant 0 : index
    %c0_0 = arith.constant 0 : index
    %c0_1 = arith.constant 0 : index
    %c0_2 = arith.constant 0 : index
    %0 = vector.load %arg2[%c0, %c0_0, %c0_1, %c0_2] : memref<1x3x2x128xf32, #tpu.memory_space<vmem>>, vector<1x1x2x128xf32>
    %1 = vector.shape_cast %0 : vector<1x1x2x128xf32> to vector<2x128xf32>
    %c0_3 = arith.constant 0 : index
    %c1 = arith.constant 1 : index
    %c0_4 = arith.constant 0 : index
    %c0_5 = arith.constant 0 : index
    %2 = vector.load %arg2[%c0_3, %c1, %c0_4, %c0_5] : memref<1x3x2x128xf32, #tpu.memory_space<vmem>>, vector<1x1x2x128xf32>
    %3 = vector.shape_cast %2 : vector<1x1x2x128xf32> to vector<2x128xf32>
    %c0_6 = arith.constant 0 : index
    %c2 = arith.constant 2 : index
    %c0_7 = arith.constant 0 : index
    %c0_8 = arith.constant 0 : index
    %4 = vector.load %arg2[%c0_6, %c2, %c0_7, %c0_8] : memref<1x3x2x128xf32, #tpu.memory_space<vmem>>, vector<1x1x2x128xf32>
    %5 = vector.shape_cast %4 : vector<1x1x2x128xf32> to vector<2x128xf32>
    %cst = arith.constant 2.990000e-01 : f32
    %6 = vector.broadcast %cst : f32 to vector<2x128xf32>
    %7 = arith.mulf %6, %1 : vector<2x128xf32>
    %cst_9 = arith.constant 5.870000e-01 : f32
    %8 = vector.broadcast %cst_9 : f32 to vector<2x128xf32>
    %9 = arith.mulf %8, %3 : vector<2x128xf32>
    %10 = arith.addf %7, %9 : vector<2x128xf32>
    %cst_10 = arith.constant 1.140000e-01 : f32
    %11 = vector.broadcast %cst_10 : f32 to vector<2x128xf32>
    %12 = arith.mulf %11, %5 : vector<2x128xf32>
    %13 = arith.addf %10, %12 : vector<2x128xf32>
    %c0_11 = arith.constant 0 : index
    %c0_12 = arith.constant 0 : index
    %c0_13 = arith.constant 0 : index
    %14 = vector.load %arg3[%c0_11, %c0_12, %c0_13] : memref<1x2x128xf32, #tpu.memory_space<vmem>>, vector<1x2x128xf32>
    %15 = vector.shape_cast %14 : vector<1x2x128xf32> to vector<2x128xf32>
    %16 = vector.shape_cast %13 : vector<2x128xf32> to vector<1x2x128xf32>
    tpu.vector_store %arg3[%c0_11, %c0_12, %c0_13], %16 {strides = array<i32>} : memref<1x2x128xf32, #tpu.memory_space<vmem>>, vector<1x2x128xf32>,
    return
  }
  func.func @transform_0(%arg0: i32, %arg1: i32) -> (i32, i32, i32, i32) {
    %c0_i32 = arith.constant 0 : i32
    %c0_i32_0 = arith.constant 0 : i32
    %c0_i32_1 = arith.constant 0 : i32
    return %arg0, %c0_i32, %arg1, %c0_i32_0 : i32, i32, i32, i32
  }
  func.func @transform_1(%arg0: i32, %arg1: i32) -> (i32, i32, i32) {
    %c0_i32 = arith.constant 0 : i32
    %c0_i32_0 = arith.constant 0 : i32
    return %arg0, %arg1, %c0_i32 : i32, i32, i32
  }
}

</mosaic_0001>

<llo_original>
// kernel: tpu_custom_call.1
$region0: #{tpu_custom_call.1}
  #allocation0 [shape = 'u32[]', space=smem, size = 0x4, offset = 0x4, fixed_abs, tag = 'smem constant byte address 0x4 - core index']
  #allocation1 [shape = 'u32[144,128]{1,0:T(1,128)}', space=vmem, size = 0x12000, scoped, tag = 'internal scratch']
  %s0 = inlined_call_operand.hbm [shape: f32[2,3,2,128], index: 0, kind: input, shape index: {}]
  %s1 = inlined_call_operand.hbm [shape: f32[2,2,128], index: 1, kind: output, shape index: {}]
  %s2 = sld [smem:[#allocation0]]
  $region41: #{tpu_custom_call.1} parent=0
    _
  %s4 = ssub.s32 1, %s2
  %s5 = scalar_select 0, %s4, %s2
  $region1: #{tpu_custom_call.1} parent=0
    #allocation2 [shape = 'u8[6144]{0}', space=vmem, size = 0x1800, scoped, tag = 'input window, operand 0']
    #allocation3 [shape = 's32[2]{0}', space=sflag, size = 0x8, scoped, tag = 'scoped memory for tpu_custom_call.1']
    #allocation4 [shape = 's32[2]{0}', space=sflag, size = 0x8, scoped, tag = 'scoped memory for tpu_custom_call.1']
    #allocation5 [shape = 'u8[2048]{0}', space=vmem, size = 0x800, scoped, tag = 'output window, operand 0']
    %6 = vsyncpa [#allocation3], 0
    %s7 = scalar_lea.sflag [#allocation3], 1
    %8 = vsyncpa %s7, 0
    %9 = vsyncpa [#allocation4], 0
    %s10 = scalar_lea.sflag [#allocation4], 1
    %11 = vsyncpa %s10, 0
    loop: start=0, step=1, limit=4
    $region2: #{tpu_custom_call.1} parent=1 // loop_pre_header
      _
    $region3: #{tpu_custom_call.1} parent=1 // loop_header
      %s13 = sphi 0, %s17
      %p14 = scmp.ge.s32.totalorder %s13, 4
      %s20 = sphi 0, %s32
      %s21 = sphi 0, %s28
      %s22 = sphi 0, %s20
      %s23 = sphi 0, %s21
      %s24 = sphi 0, %s22
      %s25 = sphi 0, %s23
      %s37 = sphi 0, %s39
      %s40 = sphi 0, %s37
      %s41 = sphi 0, %s40
      %s57 = sphi 0, %s41
      %s65 = sphi 0, %s67
      %s68 = sphi 0, %s65
      %s69 = sphi 0, %s68
      %s85 = sphi 0, %s69
    $region4: #{tpu_custom_call.1} parent=1 // loop_header_branch
      %16 = sbr.rel (%p14) target = $region8
    $region5: #{tpu_custom_call.1} parent=1 // loop_body
      %s18 = ssub.s32 %s13, 1
      %s19 = ssub.s32 %s13, 2
      %s26 = sadd.s32 1, %s21
      %p27 = scmp.ge.s32.totalorder %s26, 1
      %s28 = scalar_select %p27, 0, %s26
      %s29 = sadd.s32 1, %s20
      %s30 = scalar_select %p27, %s29, %s20
      %p31 = scmp.ge.s32.totalorder %s30, 2
      %s32 = scalar_select %p31, 0, %s30
      %s33 = ssub.s32 %s20, %s32
      %s34 = ssub.s32 %s21, %s28
      %s35 = sor.u32 %s33, %s34
      %p36 = scmp.eq.s32.totalorder %s35, 0
      %s38 = sadd.s32 %s37, 1
      %s39 = scalar_select %p36, %s37, %s38
      %p42 = pneg %p36
      %p43 = scmp.eq.s32.totalorder %s13, 1
      %p44 = por %p42, %p43
      %p45 = scmp.ne.s32.totalorder %s37, %s40
      %p46 = scmp.eq.s32.totalorder %s13, 0
      %p47 = por %p45, %p46
      %p48 = scmp.ne.s32.totalorder %s37, %s40
      %p49 = scmp.eq.s32.totalorder %s18, 1
      %p50 = por %p48, %p49
      %p51 = scmp.ne.s32.totalorder %s40, %s41
      %p52 = scmp.eq.s32.totalorder %s18, 0
      %p53 = por %p51, %p52
      %p54 = scmp.ne.s32.totalorder %s40, %s41
      %p55 = scmp.eq.s32.totalorder %s19, 1
      %p56 = por %p54, %p55
      %p58 = scmp.ne.s32.totalorder %s41, %s57
      %p59 = scmp.eq.s32.totalorder %s19, 0
      %p60 = por %p58, %p59
      %s61 = ssub.s32 %s20, %s32
      %s62 = ssub.s32 %s21, %s28
      %s63 = sor.u32 %s61, %s62
      %p64 = scmp.eq.s32.totalorder %s63, 0
      %s66 = sadd.s32 %s65, 1
      %s67 = scalar_select %p64, %s65, %s66
      %p70 = pneg %p64
      %p71 = scmp.eq.s32.totalorder %s13, 1
      %p72 = por %p70, %p71
      %p73 = scmp.ne.s32.totalorder %s65, %s68
      %p74 = scmp.eq.s32.totalorder %s13, 0
      %p75 = por %p73, %p74
      %p76 = scmp.ne.s32.totalorder %s65, %s68
      %p77 = scmp.eq.s32.totalorder %s18, 1
      %p78 = por %p76, %p77
      %p79 = scmp.ne.s32.totalorder %s68, %s69
      %p80 = scmp.eq.s32.totalorder %s18, 0
      %p81 = por %p79, %p80
      %p82 = scmp.ne.s32.totalorder %s68, %s69
      %p83 = scmp.eq.s32.totalorder %s19, 1
      %p84 = por %p82, %p83
      %p86 = scmp.ne.s32.totalorder %s69, %s85
      %p87 = scmp.eq.s32.totalorder %s19, 0
      %p88 = por %p86, %p87
      %p89 = scmp.le.s32.totalorder 1, %s13
      %p90 = scmp.lt.s32.totalorder %s13, 3
      %p91 = pnand %p89, %p90
      %p92 = pneg %p91
      // Predicated region
      $region9: #{tpu_custom_call.1} parent=5 // pred_check
        _
      $region10: #{tpu_custom_call.1} parent=5 // pred_check_branch
        %94 = sbr.rel (%p91) target = $region12
      $region11: #{tpu_custom_call.1} parent=5 // pred_region
        %s95 = ssub.s32 %s13, 1
      $region12: #{tpu_custom_call.1} parent=5 // pred_fallthru
        _
      %p96 = scmp.lt.s32.totalorder %s13, 2
      // Predicated region
      $region13: #{tpu_custom_call.1} parent=5 // pred_check
        %p97 = pneg %p96
      $region14: #{tpu_custom_call.1} parent=5 // pred_check_branch
        %99 = sbr.rel (%p97) target = $region16
      $region15: #{tpu_custom_call.1} parent=5 // pred_region
        // Predicated region
        $region17: #{tpu_custom_call.1} parent=15 // pred_check
          %p100 = pneg %p47
        $region18: #{tpu_custom_call.1} parent=15 // pred_check_branch
          %102 = sbr.rel (%p100) target = $region20
        $region19: #{tpu_custom_call.1} parent=15 // pred_region
          %s103 = sand.u32 %s37, 1
          %s104 = scalar_lea.sflag [#allocation3], %s103
          %s105 = sand.u32 %s37, 1
          %s106 = smul.addr %s105, 6
          %s107 = scalar_lea.vmem [#allocation2], %s106
          %s109 = ssub.s32 96, 96
          %110 = vsyncadd %s104, %s109
          %s111 = smul.addr %s20, 3
          %s112 = sadd.s32 %s21, %s111
          %s113 = smul.addr %s112, 32
          %s114 = scalar_lea.hbm %s0, %s113
          %s115 = sshll.u32 %s107, 4
          %s116 = int_to_ptr.vmem [resolvable:$true] %s115
          %121 = dma.hbm_to_vmem [thread:$0]  %s114, 96, %s116, %s104, 32, 32, 2
        $region20: #{tpu_custom_call.1} parent=15 // pred_fallthru
          _
      $region16: #{tpu_custom_call.1} parent=5 // pred_fallthru
        _
      %p122 = scmp.le.s32.totalorder 1, %s13
      %p123 = scmp.lt.s32.totalorder %s13, 3
      %p124 = pnand %p122, %p123
      %p125 = pneg %p124
      // Predicated region
      $region21: #{tpu_custom_call.1} parent=5 // pred_check
        _
      $region22: #{tpu_custom_call.1} parent=5 // pred_check_branch
        %127 = sbr.rel (%p124) target = $region24
      $region23: #{tpu_custom_call.1} parent=5 // pred_region
        %s128 = ssub.s32 %s13, 1
        %s129 = sand.u32 %s40, 1
        %s130 = scalar_lea.sflag [#allocation3], %s129
        %s131 = sand.u32 %s40, 1
        %s132 = smul.addr %s131, 6
        %s133 = scalar_lea.vmem [#allocation2], %s132
        // Predicated region
        $region25: #{tpu_custom_call.1} parent=23 // pred_check
          %p134 = pneg %p53
        $region26: #{tpu_custom_call.1} parent=23 // pred_check_branch
          %136 = sbr.rel (%p134) target = $region28
        $region27: #{tpu_custom_call.1} parent=23 // pred_region
          %137 = dma.done %s130, 96
        $region28: #{tpu_custom_call.1} parent=23 // pred_fallthru
          _
        %s138 = sand.u32 %s40, 1
        %s139 = scalar_lea.sflag [#allocation3], %s138
        %s140 = sand.u32 %s40, 1
        %s141 = smul.addr %s140, 6
        %s142 = scalar_lea.vmem [#allocation2], %s141
        %p143 = pneg %p53
        %p144 = pneg %p50
        %p145 = pneg %p81
        %p146 = pneg %p78
        %s147 = sand.u32 %s68, 1
        %s148 = scalar_lea.sflag [#allocation4], %s147
        %s149 = sand.u32 %s68, 1
        %s150 = smul.addr %s149, 2
        %s151 = scalar_lea.vmem [#allocation5], %s150
        %v152 = vld [vmem:[%s133] sm:$0x3]
        %s153 = scalar_lea.vmem %s133, 2 [#allocation2]
        %v154 = vld [vmem:[%s153] sm:$0x3]
        %s155 = scalar_lea.vmem %s133, 4 [#allocation2]
        %v156 = vld [vmem:[%s155] sm:$0x3]
        %v157 = vmul.f32 %v152, 0.299
        %v158 = vmul.f32 %v154, 0.587
        %v159 = vadd.f32 %v157, %v158
        %v160 = vmul.f32 %v156, 0.114
        %v161 = vadd.f32 %v159, %v160
        %162 = vst [vmem:[%s151] sm:$0x3] %v161
        %s163 = sand.u32 %s68, 1
        %s164 = scalar_lea.sflag [#allocation4], %s163
        %s165 = sand.u32 %s68, 1
        %s166 = smul.addr %s165, 2
        %s167 = scalar_lea.vmem [#allocation5], %s166
        // Predicated region
        $region29: #{tpu_custom_call.1} parent=23 // pred_check
          %p168 = pneg %p78
        $region30: #{tpu_custom_call.1} parent=23 // pred_check_branch
          %170 = sbr.rel (%p168) target = $region32
        $region31: #{tpu_custom_call.1} parent=23 // pred_region
          %s172 = ssub.s32 32, 32
          %173 = vsyncadd %s164, %s172
          %s174 = sadd.s32 %s23, %s22
          %s175 = smul.addr %s174, 32
          %s176 = scalar_lea.hbm %s1, %s175
          %s178 = sshll.u32 %s167, 4
          %s179 = int_to_ptr.vmem [resolvable:$true] %s178
          %181 = dma.vmem_to_hbm [thread:$0]  %s179, 32, %s176, %s164
        $region32: #{tpu_custom_call.1} parent=23 // pred_fallthru
          _
      $region24: #{tpu_custom_call.1} parent=5 // pred_fallthru
        _
      %p182 = scmp.le.s32.totalorder 2, %s13
      // Predicated region
      $region33: #{tpu_custom_call.1} parent=5 // pred_check
        %p183 = pneg %p182
      $region34: #{tpu_custom_call.1} parent=5 // pred_check_branch
        %185 = sbr.rel (%p183) target = $region36
      $region35: #{tpu_custom_call.1} parent=5 // pred_region
        %s186 = ssub.s32 %s13, 2
        // Predicated region
        $region37: #{tpu_custom_call.1} parent=35 // pred_check
          %p187 = pneg %p84
        $region38: #{tpu_custom_call.1} parent=35 // pred_check_branch
          %189 = sbr.rel (%p187) target = $region40
        $region39: #{tpu_custom_call.1} parent=35 // pred_region
          %s190 = sand.u32 %s69, 1
          %s191 = scalar_lea.sflag [#allocation4], %s190
          %s192 = sand.u32 %s69, 1
          %s193 = smul.addr %s192, 2
          %s194 = scalar_lea.vmem [#allocation5], %s193
          %195 = dma.done %s191, 32
        $region40: #{tpu_custom_call.1} parent=35 // pred_fallthru
          _
      $region36: #{tpu_custom_call.1} parent=5 // pred_fallthru
        _
    $region6: #{tpu_custom_call.1} parent=1 // loop_footer
      %s17 = sadd.s32 1, %s13
    $region7: #{tpu_custom_call.1} parent=1 // loop_footer_branch
      %12 = sbr.rel target = $region3
    $region8: #{tpu_custom_call.1} parent=1 // loop_exit
      _
    %196 = vsyncpa [#allocation3], 1
    %s197 = scalar_lea.sflag [#allocation3], 1
    %198 = vsyncpa %s197, 1
    %199 = vsyncpa [#allocation4], 1
    %s200 = scalar_lea.sflag [#allocation4], 1
    %201 = vsyncpa %s200, 1

</llo_original>
